<compile_context>
chip_gen: v6e
topology: v6e:2x2x1
jax: 0.10.0
libtpu: 0.0.40
codegen_flags: <defaults>
</compile_context>

<pallas_src>
import numpy as np

import jax
import jax.numpy as jnp
from jax.experimental import pallas as pl
from jax.experimental.pallas import tpu as pltpu

LANE = 128                              # text length padded to a multiple of the 128-lane axis
TARGET_BLOCK_BYTES = 2 * 1024 * 1024    # ~2 MiB int32 blocks; 4 bufs (in/out x2) ~ 8 MiB VMEM
PAD = -1                                # pad sentinel (valid codepoints are >= 0)


def _round_up(x: int, m: int) -> int:
    return ((x + m - 1) // m) * m


def _preprocess_kernel(codes_ref, out_ref):
    """ASCII lower() + Unicode-whitespace strip() on a (rows, L) int32 codepoint tile.

    PAD (-1) marks positions past end-of-string. strip() is emulated by writing PAD
    over leading/trailing whitespace (output is not left-compacted; host decode drops PAD).
    """
    c = codes_ref[...]                                   # (rows, L) int32

    # --- lower(): ASCII 'A'..'Z' -> 'a'..'z' (elementwise, VPU) ---
    # TODO(synk): non-ASCII case folding (e.g. 'É'->'é') is not implemented on-device.
    is_upper = (c >= 65) & (c <= 90)
    lower = jnp.where(is_upper, c + 32, c)

    # --- whitespace predicate: the codepoints Python str.strip() removes ---
    is_ws = (
        ((lower >= 0x09) & (lower <= 0x0D))
        | ((lower >= 0x1C) & (lower <= 0x20))
        | (lower == 0x85) | (lower == 0xA0) | (lower == 0x1680)
        | ((lower >= 0x2000) & (lower <= 0x200A))
        | (lower == 0x2028) | (lower == 0x2029)
        | (lower == 0x202F) | (lower == 0x205F) | (lower == 0x3000)
    )
    is_content = (~is_ws) & (lower >= 0)                 # not whitespace, not PAD

    # --- strip(): keep [first_content, last_content] via iota + masked min/max ---
    L = lower.shape[-1]
    iota = jax.lax.broadcasted_iota(jnp.int32, lower.shape, dimension=1)
    first = jnp.min(jnp.where(is_content, iota, L), axis=-1, keepdims=True)   # (rows, 1)
    last = jnp.max(jnp.where(is_content, iota, -1), axis=-1, keepdims=True)   # (rows, 1)
    keep = (iota >= first) & (iota <= last)

    out_ref[...] = jnp.where(keep, lower, PAD)


def _choose_tiling(batch: int, length: int):
    """Pick (padded_rows, row_block): ~2 MiB blocks, >=2 grid steps when possible."""
    rows8 = _round_up(max(batch, 1), 8)                  # int32 sublane tile
    # Largest row block (multiple of 8) keeping one int32 block <= TARGET_BLOCK_BYTES.
    rb_cap = max(8, (TARGET_BLOCK_BYTES // (length * 4)) // 8 * 8)
    if rows8 <= 8:
        return rows8, rows8                              # tiny batch: single block
    # >=2 grid steps so dimension_semantics=("parallel",) can use both v7x TensorCores,
    # and balance steps so row padding waste stays small.
    steps = max(2, pl.cdiv(rows8, rb_cap))
    rb = _round_up(pl.cdiv(rows8, steps), 8)
    padded_rows = _round_up(rows8, rb)
    return padded_rows, rb


_CALL_CACHE = {}


def _build_call(rows: int, rb: int, length: int):
    """Cached jitted pallas_call for a (rows, length) int32 codepoint array."""
    key = (rows, rb, length)
    fn = _CALL_CACHE.get(key)
    if fn is None:
        call = pl.pallas_call(
            _preprocess_kernel,
            out_shape=jax.ShapeDtypeStruct((rows, length), jnp.int32),
            grid=(rows // rb,),
            in_specs=[pl.BlockSpec((rb, length), lambda i: (i, 0))],
            out_specs=pl.BlockSpec((rb, length), lambda i: (i, 0)),
            input_output_aliases={0: 0},                 # reuse the input HBM buffer
            compiler_params=pltpu.CompilerParams(
                dimension_semantics=("parallel",)),      # rows split across TCs on v7x
        )
        fn = jax.jit(call, donate_argnums=0)
        _CALL_CACHE[key] = fn
    return fn


def _encode_batch(texts):
    """Bulk encode: list[str] -> (padded_rows, length) int32 codepoints (PAD = -1)."""
    batch = len(texts)
    encoded = [
        np.frombuffer(t.encode("utf-32-le"), dtype=np.uint32).astype(np.int32)
        for t in texts
    ]
    max_len = max((e.shape[0] for e in encoded), default=1)
    length = _round_up(max(max_len, 1), LANE)            # lane-dense last dim
    rows, rb = _choose_tiling(batch, length)
    arr = np.full((rows, length), PAD, dtype=np.int32)
    for i, e in enumerate(encoded):
        arr[i, : e.shape[0]] = e
    return arr, rb


def _decode_batch(codes_host: np.ndarray, batch: int):
    """Bulk decode: drop PAD values, reassemble strings via utf-32-le (no per-char chr)."""
    out = []
    for row in codes_host[:batch]:
        kept = row[row >= 0].astype(np.uint32)
        out.append(kept.tobytes().decode("utf-32-le"))
    return out


class T5TextPreprocessPallas:
    """JAX/Pallas port of T5TextPreprocess.

    Only the clean_caption=False branch (text.lower().strip()) runs on-device.
    """

    def __init__(self, clean_caption: bool = False) -> None:
        # TODO(synk): clean_caption=True has no Pallas equivalent; the lower().strip()
        #             branch is always used here.
        self.clean_caption = clean_caption

    def batch_forward(self, texts):
        """Process many captions in a single pallas_call."""
        codes, rb = _encode_batch(texts)
        rows, length = codes.shape
        fn = _build_call(rows, rb, length)
        out = fn(jnp.asarray(codes))
        out = jax.block_until_ready(out)
        return _decode_batch(np.asarray(jax.device_get(out)), len(texts))

    def __call__(self, text: str) -> str:
        return self.batch_forward([text])[0]


if __name__ == "__main__":
    # Deterministic example inputs: batch of 8 captions built from PRNG-selected
    # uppercase ASCII tails, plus mixed whitespace (space/NBSP/\n/\t/\x1c) at the
    # edges and an interior NUL, to exercise lower() + strip() + NUL preservation.
    key = jax.random.PRNGKey(0)
    batch = 8
    keys = jax.random.split(key, batch)
    texts = []
    for i in range(batch):
        rand_codes = jax.random.randint(keys[i], (8,), 65, 91)  # 8 random uppercase letters
        tail = "".join(chr(int(v)) for v in np.asarray(jax.device_get(rand_codes)))
        texts.append(
            "  \xa0 Caption %d: A Photo Of A\x00CAT Sitting On The Mat %s  \n\t\x1c"
            % (i, tail)
        )
    # One caption longer than 128 codepoints exercises the adaptive lane-padded length.
    texts[-1] = "   " + ("A Very Long Caption " * 12) + texts[-1]

    model = T5TextPreprocessPallas(clean_caption=False)

    # Batched path: one pallas_call for all captions.
    outs = model.batch_forward(texts)
    for t, o in zip(texts, outs):
        expected = t.lower().strip()
        assert o == expected, f"mismatch:\n got: {o!r}\n exp: {expected!r}"

    # Single-string path (routes through the same batched kernel).
    single = model(texts[0])
    assert single == texts[0].lower().strip()

    print("KERNEL_OK")
</pallas_src>

<mosaic_0001>
module attributes {stable_mosaic.version = 11 : i64} {
  func.func @_preprocess_kernel(%arg0: i32, %arg1: memref<8x384xi32, #tpu.memory_space<vmem>>, %arg2: memref<8x384xi32, #tpu.memory_space<vmem>>) attributes {dimension_semantics = [#tpu.dimension_semantics<parallel>], iteration_bounds = array<i64: 1>, scalar_prefetch = 0 : i64, scratch_operands = 0 : i64, tpu.core_type = #tpu.core_type<tc>, window_params = [{transform_indices = @transform_0, window_bounds = array<i64: 8, 384>}, {transform_indices = @transform_1, window_bounds = array<i64: 8, 384>}]} {
    %c0 = arith.constant 0 : index
    %c0_0 = arith.constant 0 : index
    %0 = vector.load %arg1[%c0, %c0_0] : memref<8x384xi32, #tpu.memory_space<vmem>>, vector<8x384xi32>
    %c65_i32 = arith.constant 65 : i32
    %1 = vector.broadcast %c65_i32 : i32 to vector<8x384xi32>
    %2 = arith.cmpi sge, %0, %1 : vector<8x384xi32>
    %c90_i32 = arith.constant 90 : i32
    %3 = vector.broadcast %c90_i32 : i32 to vector<8x384xi32>
    %4 = arith.cmpi sle, %0, %3 : vector<8x384xi32>
    %5 = arith.andi %2, %4 : vector<8x384xi1>
    %c32_i32 = arith.constant 32 : i32
    %6 = vector.broadcast %c32_i32 : i32 to vector<8x384xi32>
    %7 = arith.addi %0, %6 : vector<8x384xi32>
    %8 = arith.select %5, %7, %0 : vector<8x384xi1>, vector<8x384xi32>
    %c9_i32 = arith.constant 9 : i32
    %9 = vector.broadcast %c9_i32 : i32 to vector<8x384xi32>
    %10 = arith.cmpi sge, %8, %9 : vector<8x384xi32>
    %c13_i32 = arith.constant 13 : i32
    %11 = vector.broadcast %c13_i32 : i32 to vector<8x384xi32>
    %12 = arith.cmpi sle, %8, %11 : vector<8x384xi32>
    %13 = arith.andi %10, %12 : vector<8x384xi1>
    %c28_i32 = arith.constant 28 : i32
    %14 = vector.broadcast %c28_i32 : i32 to vector<8x384xi32>
    %15 = arith.cmpi sge, %8, %14 : vector<8x384xi32>
    %c32_i32_1 = arith.constant 32 : i32
    %16 = vector.broadcast %c32_i32_1 : i32 to vector<8x384xi32>
    %17 = arith.cmpi sle, %8, %16 : vector<8x384xi32>
    %18 = arith.andi %15, %17 : vector<8x384xi1>
    %19 = arith.ori %13, %18 : vector<8x384xi1>
    %c133_i32 = arith.constant 133 : i32
    %20 = vector.broadcast %c133_i32 : i32 to vector<8x384xi32>
    %21 = arith.cmpi eq, %8, %20 : vector<8x384xi32>
    %22 = arith.ori %19, %21 : vector<8x384xi1>
    %c160_i32 = arith.constant 160 : i32
    %23 = vector.broadcast %c160_i32 : i32 to vector<8x384xi32>
    %24 = arith.cmpi eq, %8, %23 : vector<8x384xi32>
    %25 = arith.ori %22, %24 : vector<8x384xi1>
    %c5760_i32 = arith.constant 5760 : i32
    %26 = vector.broadcast %c5760_i32 : i32 to vector<8x384xi32>
    %27 = arith.cmpi eq, %8, %26 : vector<8x384xi32>
    %28 = arith.ori %25, %27 : vector<8x384xi1>
    %c8192_i32 = arith.constant 8192 : i32
    %29 = vector.broadcast %c8192_i32 : i32 to vector<8x384xi32>
    %30 = arith.cmpi sge, %8, %29 : vector<8x384xi32>
    %c8202_i32 = arith.constant 8202 : i32
    %31 = vector.broadcast %c8202_i32 : i32 to vector<8x384xi32>
    %32 = arith.cmpi sle, %8, %31 : vector<8x384xi32>
    %33 = arith.andi %30, %32 : vector<8x384xi1>
    %34 = arith.ori %28, %33 : vector<8x384xi1>
    %c8232_i32 = arith.constant 8232 : i32
    %35 = vector.broadcast %c8232_i32 : i32 to vector<8x384xi32>
    %36 = arith.cmpi eq, %8, %35 : vector<8x384xi32>
    %37 = arith.ori %34, %36 : vector<8x384xi1>
    %c8233_i32 = arith.constant 8233 : i32
    %38 = vector.broadcast %c8233_i32 : i32 to vector<8x384xi32>
    %39 = arith.cmpi eq, %8, %38 : vector<8x384xi32>
    %40 = arith.ori %37, %39 : vector<8x384xi1>
    %c8239_i32 = arith.constant 8239 : i32
    %41 = vector.broadcast %c8239_i32 : i32 to vector<8x384xi32>
    %42 = arith.cmpi eq, %8, %41 : vector<8x384xi32>
    %43 = arith.ori %40, %42 : vector<8x384xi1>
    %c8287_i32 = arith.constant 8287 : i32
    %44 = vector.broadcast %c8287_i32 : i32 to vector<8x384xi32>
    %45 = arith.cmpi eq, %8, %44 : vector<8x384xi32>
    %46 = arith.ori %43, %45 : vector<8x384xi1>
    %c12288_i32 = arith.constant 12288 : i32
    %47 = vector.broadcast %c12288_i32 : i32 to vector<8x384xi32>
    %48 = arith.cmpi eq, %8, %47 : vector<8x384xi32>
    %49 = arith.ori %46, %48 : vector<8x384xi1>
    %cst = arith.constant dense<true> : vector<8x384xi1>
    %50 = arith.xori %49, %cst : vector<8x384xi1>
    %c0_i32 = arith.constant 0 : i32
    %51 = vector.broadcast %c0_i32 : i32 to vector<8x384xi32>
    %52 = arith.cmpi sge, %8, %51 : vector<8x384xi32>
    %53 = arith.andi %50, %52 : vector<8x384xi1>
    %54 = tpu.iota {dimensions = array<i32: 1>} : vector<8x384xi32>
    %c384_i32 = arith.constant 384 : i32
    %55 = vector.broadcast %c384_i32 : i32 to vector<8x384xi32>
    %56 = arith.select %53, %54, %55 : vector<8x384xi1>, vector<8x384xi32>
    %cst_2 = arith.constant dense<2147483647> : vector<8xi32>
    %57 = vector.multi_reduction <minsi>, %56, %cst_2 [1] : vector<8x384xi32> to vector<8xi32>
    %58 = vector.shape_cast %57 : vector<8xi32> to vector<8x1xi32>
    %c-1_i32 = arith.constant -1 : i32
    %59 = vector.broadcast %c-1_i32 : i32 to vector<8x384xi32>
    %60 = arith.select %53, %54, %59 : vector<8x384xi1>, vector<8x384xi32>
    %cst_3 = arith.constant dense<-2147483648> : vector<8xi32>
    %61 = vector.multi_reduction <maxsi>, %60, %cst_3 [1] : vector<8x384xi32> to vector<8xi32>
    %62 = vector.shape_cast %61 : vector<8xi32> to vector<8x1xi32>
    %63 = vector.broadcast %58 : vector<8x1xi32> to vector<8x384xi32>
    %64 = arith.cmpi sge, %54, %63 : vector<8x384xi32>
    %65 = vector.broadcast %62 : vector<8x1xi32> to vector<8x384xi32>
    %66 = arith.cmpi sle, %54, %65 : vector<8x384xi32>
    %67 = arith.andi %64, %66 : vector<8x384xi1>
    %c-1_i32_4 = arith.constant -1 : i32
    %68 = vector.broadcast %c-1_i32_4 : i32 to vector<8x384xi32>
    %69 = arith.select %67, %8, %68 : vector<8x384xi1>, vector<8x384xi32>
    %c0_5 = arith.constant 0 : index
    %c0_6 = arith.constant 0 : index
    %70 = vector.load %arg2[%c0_5, %c0_6] : memref<8x384xi32, #tpu.memory_space<vmem>>, vector<8x384xi32>
    tpu.vector_store %arg2[%c0_5, %c0_6], %69 {strides = array<i32>} : memref<8x384xi32, #tpu.memory_space<vmem>>, vector<8x384xi32>,
    return
  }
  func.func @transform_0(%arg0: i32) -> (i32, i32) {
    %c0_i32 = arith.constant 0 : i32
    %c0_i32_0 = arith.constant 0 : i32
    return %arg0, %c0_i32 : i32, i32
  }
  func.func @transform_1(%arg0: i32) -> (i32, i32) {
    %c0_i32 = arith.constant 0 : i32
    %c0_i32_0 = arith.constant 0 : i32
    return %arg0, %c0_i32 : i32, i32
  }
}

</mosaic_0001>

<llo_original>
// kernel: tpu_custom_call.1
$region0: #{tpu_custom_call.1}
  #allocation0 [shape = 'u32[]', space=smem, size = 0x4, offset = 0x4, fixed_abs, tag = 'smem constant byte address 0x4 - core index']
  #allocation1 [shape = 'u32[144,128]{1,0:T(1,128)}', space=vmem, size = 0x12000, scoped, tag = 'internal scratch']
  %s0 = inlined_call_operand.hbm [shape: s32[8,384], index: 0, kind: input, shape index: {}, may-alias: {0,1}]
  %s1 = inlined_call_operand.hbm [shape: s32[8,384], index: 1, kind: output, shape index: {}, may-alias: {0,1}]
  %s2 = sld [smem:[#allocation0]]
  $region18: #{tpu_custom_call.1} parent=0
    _
  %s4 = ssub.s32 1, %s2
  %s5 = scalar_select 0, %s4, %s2
  $region1: #{tpu_custom_call.1} parent=0
    #allocation2 [shape = 'u8[12288]{0}', space=vmem, size = 0x3000, scoped, tag = 'input window, operand 0, single buffered']
    #allocation3 [shape = 's32[1]{0}', space=sflag, size = 0x4, scoped, tag = 'scoped memory for tpu_custom_call.1']
    #allocation4 [shape = 's32[1]{0}', space=sflag, size = 0x4, scoped, tag = 'scoped memory for tpu_custom_call.1']
    #allocation5 [shape = 'u8[12288]{0}', space=vmem, size = 0x3000, scoped, tag = 'output window, operand 0, single buffered']
    %6 = vsyncpa [#allocation3], 0
    %7 = vsyncpa [#allocation4], 0
    // Predicated region
    $region2: #{tpu_custom_call.1} parent=1 // pred_check
      _
    $region3: #{tpu_custom_call.1} parent=1 // pred_check_branch
      %9 = sbr.rel (0) target = $region5
    $region4: #{tpu_custom_call.1} parent=1 // pred_region
      %s11 = ssub.s32 384, 384
      %12 = vsyncadd [#allocation3], %s11
      %s14 = sshll.u32 [#allocation2], 4
      %s15 = int_to_ptr.vmem [resolvable:$true] %s14
      %17 = dma.hbm_to_vmem [thread:$0]  %s0, 384, %s15, [#allocation3]
    $region5: #{tpu_custom_call.1} parent=1 // pred_fallthru
      _
    // Predicated region
    $region6: #{tpu_custom_call.1} parent=1 // pred_check
      _
    $region7: #{tpu_custom_call.1} parent=1 // pred_check_branch
      %19 = sbr.rel (0) target = $region9
    $region8: #{tpu_custom_call.1} parent=1 // pred_region
      %20 = dma.done [#allocation3], 384
    $region9: #{tpu_custom_call.1} parent=1 // pred_fallthru
      _
    %v21 = vld [vmem:[#allocation2] sm:$0xff]
    %v22 = vld [vmem:[#allocation2 + $0x8] sm:$0xff]
    %v23 = vld [vmem:[#allocation2 + $0x10] sm:$0xff]
    %vm24 = vcmp.ge.s32.totalorder %v21, 65
    %vm25 = vcmp.ge.s32.totalorder %v22, 65
    %vm26 = vcmp.ge.s32.totalorder %v23, 65
    %vm27 = vcmp.le.s32.totalorder %v21, 90
    %vm28 = vcmp.le.s32.totalorder %v22, 90
    %vm29 = vcmp.le.s32.totalorder %v23, 90
    %vm30 = vmand %vm24, %vm27
    %vm31 = vmand %vm25, %vm28
    %vm32 = vmand %vm26, %vm29
    %v33 = vadd.s32 %v21, 32
    %v34 = vadd.s32 %v22, 32
    %v35 = vadd.s32 %v23, 32
    %v36 = vsel %vm30, %v33, %v21
    %v37 = vsel %vm31, %v34, %v22
    %v38 = vsel %vm32, %v35, %v23
    %vm39 = vcmp.ge.s32.totalorder %v36, 9
    %vm40 = vcmp.ge.s32.totalorder %v37, 9
    %vm41 = vcmp.ge.s32.totalorder %v38, 9
    %vm42 = vcmp.le.s32.totalorder %v36, 13
    %vm43 = vcmp.le.s32.totalorder %v37, 13
    %vm44 = vcmp.le.s32.totalorder %v38, 13
    %vm45 = vmand %vm39, %vm42
    %vm46 = vmand %vm40, %vm43
    %vm47 = vmand %vm41, %vm44
    %vm48 = vcmp.ge.s32.totalorder %v36, 28
    %vm49 = vcmp.ge.s32.totalorder %v37, 28
    %vm50 = vcmp.ge.s32.totalorder %v38, 28
    %vm51 = vcmp.le.s32.totalorder %v36, 32
    %vm52 = vcmp.le.s32.totalorder %v37, 32
    %vm53 = vcmp.le.s32.totalorder %v38, 32
    %vm54 = vmand %vm48, %vm51
    %vm55 = vmand %vm49, %vm52
    %vm56 = vmand %vm50, %vm53
    %vm57 = vmor %vm45, %vm54
    %vm58 = vmor %vm46, %vm55
    %vm59 = vmor %vm47, %vm56
    %vm60 = vcmp.eq.s32.totalorder %v36, 133
    %vm61 = vcmp.eq.s32.totalorder %v37, 133
    %vm62 = vcmp.eq.s32.totalorder %v38, 133
    %vm63 = vmor %vm57, %vm60
    %vm64 = vmor %vm58, %vm61
    %vm65 = vmor %vm59, %vm62
    %vm66 = vcmp.eq.s32.totalorder %v36, 160
    %vm67 = vcmp.eq.s32.totalorder %v37, 160
    %vm68 = vcmp.eq.s32.totalorder %v38, 160
    %vm69 = vmor %vm63, %vm66
    %vm70 = vmor %vm64, %vm67
    %vm71 = vmor %vm65, %vm68
    %vm72 = vcmp.eq.s32.totalorder %v36, 5760
    %vm73 = vcmp.eq.s32.totalorder %v37, 5760
    %vm74 = vcmp.eq.s32.totalorder %v38, 5760
    %vm75 = vmor %vm69, %vm72
    %vm76 = vmor %vm70, %vm73
    %vm77 = vmor %vm71, %vm74
    %vm78 = vcmp.ge.s32.totalorder %v36, 8192
    %vm79 = vcmp.ge.s32.totalorder %v37, 8192
    %vm80 = vcmp.ge.s32.totalorder %v38, 8192
    %vm81 = vcmp.le.s32.totalorder %v36, 8202
    %vm82 = vcmp.le.s32.totalorder %v37, 8202
    %vm83 = vcmp.le.s32.totalorder %v38, 8202
    %vm84 = vmand %vm78, %vm81
    %vm85 = vmand %vm79, %vm82
    %vm86 = vmand %vm80, %vm83
    %vm87 = vmor %vm75, %vm84
    %vm88 = vmor %vm76, %vm85
    %vm89 = vmor %vm77, %vm86
    %vm90 = vcmp.eq.s32.totalorder %v36, 8232
    %vm91 = vcmp.eq.s32.totalorder %v37, 8232
    %vm92 = vcmp.eq.s32.totalorder %v38, 8232
    %vm93 = vmor %vm87, %vm90
    %vm94 = vmor %vm88, %vm91
    %vm95 = vmor %vm89, %vm92
    %vm96 = vcmp.eq.s32.totalorder %v36, 8233
    %vm97 = vcmp.eq.s32.totalorder %v37, 8233
    %vm98 = vcmp.eq.s32.totalorder %v38, 8233
    %vm99 = vmor %vm93, %vm96
    %vm100 = vmor %vm94, %vm97
    %vm101 = vmor %vm95, %vm98
    %vm102 = vcmp.eq.s32.totalorder %v36, 8239
    %vm103 = vcmp.eq.s32.totalorder %v37, 8239
    %vm104 = vcmp.eq.s32.totalorder %v38, 8239
    %vm105 = vmor %vm99, %vm102
    %vm106 = vmor %vm100, %vm103
    %vm107 = vmor %vm101, %vm104
    %vm108 = vcmp.eq.s32.totalorder %v36, 8287
    %vm109 = vcmp.eq.s32.totalorder %v37, 8287
    %vm110 = vcmp.eq.s32.totalorder %v38, 8287
    %vm111 = vmor %vm105, %vm108
    %vm112 = vmor %vm106, %vm109
    %vm113 = vmor %vm107, %vm110
    %vm114 = vcmp.eq.s32.totalorder %v36, 12288
    %vm115 = vcmp.eq.s32.totalorder %v37, 12288
    %vm116 = vcmp.eq.s32.totalorder %v38, 12288
    %vm117 = vmor %vm111, %vm114
    %vm118 = vmor %vm112, %vm115
    %vm119 = vmor %vm113, %vm116
    %vm120 = vmxor %vm117, 1
    %vm121 = vmxor %vm118, 1
    %vm122 = vmxor %vm119, 1
    %vm123 = vcmp.ge.s32.totalorder %v36, 0
    %vm124 = vcmp.ge.s32.totalorder %v37, 0
    %vm125 = vcmp.ge.s32.totalorder %v38, 0
    %vm126 = vmand %vm120, %vm123
    %vm127 = vmand %vm121, %vm124
    %vm128 = vmand %vm122, %vm125
    %v129 = vlaneseq
    %v130 = vand.u32 %v129, 127
    %v131 = vadd.s32 %v130, 128
    %v132 = vadd.s32 %v130, 256
    %v133 = vsel %vm126, %v130, 384
    %v134 = vsel %vm127, %v131, 384
    %v135 = vsel %vm128, %v132, 384
    %vm136 = vcmp.lt.s32.totalorder %v133, %v134
    %v137 = vsel %vm136, %v133, %v134
    %vm138 = vcmp.lt.s32.totalorder %v137, %v135
    %v139 = vsel %vm138, %v137, %v135
    %v140 = vand.u32 %v139, 65535
    %v141 = vshra.s32 %v139, 16
    %v142 = vcvt.s32.f32 %v140
    %v143 = vcvt.s32.f32 %v141
    %144 = vmin.xlane.f32.xlu0 %v143
    %v145 = vpop.xlane.xlu0 %144
    %vm146 = vcmp.eq.f32.partialorder %v143, %v145
    %v147 = vsel %vm146, %v142, inf
    %148 = vmin.xlane.f32.xlu0 %v147
    %v149 = vpop.xlane.xlu0 %148
    %v150 = vcvt.f32.s32 %v149
    %v151 = vcvt.f32.s32 %v145
    %v152 = vshll.u32 %v151, 16
    %v153 = vadd.s32 %v152, %v150
    %v154 = vsel %vm126, %v130, 4294967295
    %v155 = vsel %vm127, %v131, 4294967295
    %v156 = vsel %vm128, %v132, 4294967295
    %vm157 = vcmp.gt.s32.totalorder %v154, %v155
    %v158 = vsel %vm157, %v154, %v155
    %vm159 = vcmp.gt.s32.totalorder %v158, %v156
    %v160 = vsel %vm159, %v158, %v156
    %v161 = vand.u32 %v160, 65535
    %v162 = vshra.s32 %v160, 16
    %v163 = vcvt.s32.f32 %v161
    %v164 = vcvt.s32.f32 %v162
    %165 = vmax.xlane.f32.xlu0 %v164
    %v166 = vpop.xlane.xlu0 %165
    %vm167 = vcmp.eq.f32.partialorder %v164, %v166
    %v168 = vsel %vm167, %v163, -inf
    %169 = vmax.xlane.f32.xlu0 %v168
    %v170 = vpop.xlane.xlu0 %169
    %v171 = vcvt.f32.s32 %v170
    %v172 = vcvt.f32.s32 %v166
    %v173 = vshll.u32 %v172, 16
    %v174 = vadd.s32 %v173, %v171
    %vm175 = vcmp.ge.s32.totalorder %v130, %v153
    %vm176 = vcmp.ge.s32.totalorder %v131, %v153
    %vm177 = vcmp.ge.s32.totalorder %v132, %v153
    %vm178 = vcmp.le.s32.totalorder %v130, %v174
    %vm179 = vcmp.le.s32.totalorder %v131, %v174
    %vm180 = vcmp.le.s32.totalorder %v132, %v174
    %vm181 = vmand %vm175, %vm178
    %vm182 = vmand %vm176, %vm179
    %vm183 = vmand %vm177, %vm180
    %v184 = vsel %vm181, %v36, 4294967295
    %v185 = vsel %vm182, %v37, 4294967295
    %v186 = vsel %vm183, %v38, 4294967295
    %187 = vst [vmem:[#allocation5] sm:$0xff] %v184
    %188 = vst [vmem:[#allocation5 + $0x8] sm:$0xff] %v185
    %189 = vst [vmem:[#allocation5 + $0x10] sm:$0xff] %v186
    // Predicated region
    $region10: #{tpu_custom_call.1} parent=1 // pred_check
      _
    $region11: #{tpu_custom_call.1} parent=1 // pred_check_branch
      %191 = sbr.rel (0) target = $region13
    $region12: #{tpu_custom_call.1} parent=1 // pred_region
      %s193 = ssub.s32 384, 384
      %194 = vsyncadd [#allocation4], %s193
      %s196 = sshll.u32 [#allocation5], 4
      %s197 = int_to_ptr.vmem [resolvable:$true] %s196
      %199 = dma.vmem_to_hbm [thread:$0]  %s197, 384, %s1, [#allocation4]
    $region13: #{tpu_custom_call.1} parent=1 // pred_fallthru
      _
    // Predicated region
    $region14: #{tpu_custom_call.1} parent=1 // pred_check
      _
    $region15: #{tpu_custom_call.1} parent=1 // pred_check_branch
      %201 = sbr.rel (0) target = $region17
    $region16: #{tpu_custom_call.1} parent=1 // pred_region
      %202 = dma.done [#allocation4], 384
    $region17: #{tpu_custom_call.1} parent=1 // pred_fallthru
      _
    %203 = vsyncpa [#allocation3], 1
    %204 = vsyncpa [#allocation4], 1

</llo_original>
